<compile_context>
chip_gen: v6e
topology: v6e:2x2x1
jax: 0.10.0
libtpu: 0.0.40
codegen_flags: <defaults>
</compile_context>

<pallas_src>
import math

import jax
import jax.numpy as jnp
from jax.experimental import pallas as pl
from jax.experimental.pallas import tpu as pltpu

_GELU_C = math.sqrt(2.0 / math.pi)  # 0.7978845608...


def _gelu_tanh(x):
    """GELU(approximate='tanh'), same formula as torch.nn.GELU(approximate='tanh')."""
    return 0.5 * x * (1.0 + jnp.tanh(_GELU_C * (x + 0.044715 * (x * x * x))))


def _round_up(x, m):
    return ((x + m - 1) // m) * m


def _text_proj_kernel(x_ref, w1_ref, b1_ref, w2_ref, b2_ref, o_ref):
    """Fused linear_1 -> tanh-GELU -> linear_2 on one [tm, in_features] row tile."""
    # MXU matmul #1: [tm, in] @ [in, hid], bf16 inputs, f32 accumulation.
    h = jnp.dot(x_ref[...], w1_ref[...], preferred_element_type=jnp.float32)
    h = _gelu_tanh(h + b1_ref[...])
    # MXU matmul #2: cast the activation back to the (bf16) weight dtype, accumulate in f32.
    y = jnp.dot(h.astype(w2_ref.dtype), w2_ref[...],
                preferred_element_type=jnp.float32)
    o_ref[...] = (y + b2_ref[...]).astype(o_ref.dtype)


def pixart_alpha_text_projection(caption, params, *, row_tile=256):
    """caption: [..., in_features]. Returns [..., hidden_size] float32."""
    w1, b1, w2, b2 = params
    in_features, hidden = w1.shape
    assert w2.shape == (hidden, hidden)

    lead_shape = caption.shape[:-1]
    # Cast the caption to the (bf16) weight dtype in the wrapper -> halves the input DMA.
    x = caption.reshape(-1, in_features).astype(w1.dtype)
    m = x.shape[0]

    # Row tile: a multiple of 8 sublanes; pad rows so every tile (and store) is unmasked.
    tm = min(row_tile, _round_up(m, 8))
    m_pad = _round_up(m, tm)
    if m_pad != m:
        x = jnp.pad(x, ((0, m_pad - m), (0, 0)))
    n_tiles = m_pad // tm

    b1r = b1.reshape(1, hidden).astype(jnp.float32)
    b2r = b2.reshape(1, hidden).astype(jnp.float32)

    cost = pl.CostEstimate(
        flops=2 * m_pad * (in_features * hidden + hidden * hidden),
        transcendentals=m_pad * hidden,  # tanh inside the GELU
        bytes_accessed=int(x.size * x.dtype.itemsize
                           + w1.size * w1.dtype.itemsize
                           + w2.size * w2.dtype.itemsize
                           + b1r.size * 4 + b2r.size * 4
                           + m_pad * hidden * 4),
    )

    out = pl.pallas_call(
        _text_proj_kernel,
        out_shape=jax.ShapeDtypeStruct((m_pad, hidden), jnp.float32),
        grid=(n_tiles,),
        in_specs=[
            pl.BlockSpec((tm, in_features), lambda i: (i, 0)),       # caption row tile
            pl.BlockSpec((in_features, hidden), lambda i: (0, 0)),   # w1 (VMEM-resident)
            pl.BlockSpec((1, hidden), lambda i: (0, 0)),             # b1
            pl.BlockSpec((hidden, hidden), lambda i: (0, 0)),        # w2 (VMEM-resident)
            pl.BlockSpec((1, hidden), lambda i: (0, 0)),             # b2
        ],
        out_specs=pl.BlockSpec((tm, hidden), lambda i: (i, 0)),
        compiler_params=pltpu.CompilerParams(
            dimension_semantics=("parallel",)),
        cost_estimate=cost,
    )(x, w1, b1r, w2, b2r)

    out = out[:m]
    return out.reshape(*lead_shape, hidden)


def init_params(key, in_features, hidden_size, param_dtype=jnp.bfloat16):
    """Deterministic synthetic weights matching nn.Linear's default init.

    Weights stored as [in, out] (transposed from PyTorch) in bf16; biases stay f32.
    """
    ks = jax.random.split(key, 4)

    def uni(k, shape, fan_in):
        bound = 1.0 / math.sqrt(fan_in)
        return jax.random.uniform(k, shape, jnp.float32, -bound, bound)

    w1 = uni(ks[0], (in_features, hidden_size), in_features).astype(param_dtype)
    b1 = uni(ks[1], (hidden_size,), in_features)
    w2 = uni(ks[2], (hidden_size, hidden_size), hidden_size).astype(param_dtype)
    b2 = uni(ks[3], (hidden_size,), hidden_size)
    return (w1, b1, w2, b2)


def _reference(caption, params):
    """Pure-JAX reference with the same dtype discipline as the kernel."""
    w1, b1, w2, b2 = params
    x = caption.reshape(-1, w1.shape[0]).astype(w1.dtype)
    h = jnp.dot(x, w1, preferred_element_type=jnp.float32) + b1.reshape(1, -1)
    h = _gelu_tanh(h)
    y = jnp.dot(h.astype(w2.dtype), w2,
                preferred_element_type=jnp.float32) + b2.reshape(1, -1)
    return y.reshape(*caption.shape[:-1], w2.shape[1])


if __name__ == "__main__":
    key = jax.random.PRNGKey(0)
    k_param, k_x = jax.random.split(key)

    BATCH, SEQ, IN_FEATURES, HIDDEN = 2, 8, 256, 128
    params = init_params(k_param, IN_FEATURES, HIDDEN)
    caption = jax.random.normal(k_x, (BATCH, SEQ, IN_FEATURES), jnp.float32)

    out = pixart_alpha_text_projection(caption, params)
    jax.block_until_ready(out)

    ref = _reference(caption, params)
    assert out.shape == (BATCH, SEQ, HIDDEN)
    assert jnp.allclose(out, ref, atol=2e-2, rtol=2e-2), \
        float(jnp.max(jnp.abs(out - ref)))

    print("KERNEL_OK")
</pallas_src>

<mosaic_0001>
module attributes {stable_mosaic.version = 11 : i64} {
  func.func @_text_proj_kernel(%arg0: i32, %arg1: memref<16x256xbf16, #tpu.memory_space<vmem>>, %arg2: memref<256x128xbf16, #tpu.memory_space<vmem>>, %arg3: memref<1x128xf32, #tpu.memory_space<vmem>>, %arg4: memref<128x128xbf16, #tpu.memory_space<vmem>>, %arg5: memref<1x128xf32, #tpu.memory_space<vmem>>, %arg6: memref<16x128xf32, #tpu.memory_space<vmem>>) attributes {dimension_semantics = [#tpu.dimension_semantics<parallel>], iteration_bounds = array<i64: 1>, scalar_prefetch = 0 : i64, scratch_operands = 0 : i64, tpu.core_type = #tpu.core_type<tc>, window_params = [{transform_indices = @transform_0, window_bounds = array<i64: 16, 256>}, {pipeline_mode = #tpu.pipeline_mode<synchronous>, transform_indices = @transform_1, window_bounds = array<i64: 256, 128>}, {pipeline_mode = #tpu.pipeline_mode<synchronous>, transform_indices = @transform_2, window_bounds = array<i64: 1, 128>}, {pipeline_mode = #tpu.pipeline_mode<synchronous>, transform_indices = @transform_3, window_bounds = array<i64: 128, 128>}, {pipeline_mode = #tpu.pipeline_mode<synchronous>, transform_indices = @transform_4, window_bounds = array<i64: 1, 128>}, {transform_indices = @transform_5, window_bounds = array<i64: 16, 128>}]} {
    %c0 = arith.constant 0 : index
    %c0_0 = arith.constant 0 : index
    %0 = vector.load %arg1[%c0, %c0_0] : memref<16x256xbf16, #tpu.memory_space<vmem>>, vector<16x256xbf16>
    %c0_1 = arith.constant 0 : index
    %c0_2 = arith.constant 0 : index
    %1 = vector.load %arg2[%c0_1, %c0_2] : memref<256x128xbf16, #tpu.memory_space<vmem>>, vector<256x128xbf16>
    %cst = arith.constant dense<0.000000e+00> : vector<16x128xf32>
    %2 = tpu.matmul %0, %1, %cst {dimension_numbers = #tpu.dot_dimension_numbers<[1], [0], [0], [1], [0, 0, 1, 1], [], []>} : vector<16x256xbf16>, vector<256x128xbf16>, vector<16x128xf32> -> vector<16x128xf32>
    %c0_3 = arith.constant 0 : index
    %c0_4 = arith.constant 0 : index
    %3 = vector.load %arg3[%c0_3, %c0_4] : memref<1x128xf32, #tpu.memory_space<vmem>>, vector<1x128xf32>
    %4 = vector.broadcast %3 : vector<1x128xf32> to vector<16x128xf32>
    %5 = arith.addf %2, %4 : vector<16x128xf32>
    %cst_5 = arith.constant 5.000000e-01 : f32
    %6 = vector.broadcast %cst_5 : f32 to vector<16x128xf32>
    %7 = arith.mulf %6, %5 : vector<16x128xf32>
    %8 = arith.mulf %5, %5 : vector<16x128xf32>
    %9 = arith.mulf %8, %5 : vector<16x128xf32>
    %cst_6 = arith.constant 4.471500e-02 : f32
    %10 = vector.broadcast %cst_6 : f32 to vector<16x128xf32>
    %11 = arith.mulf %10, %9 : vector<16x128xf32>
    %12 = arith.addf %5, %11 : vector<16x128xf32>
    %cst_7 = arith.constant 0.797884583 : f32
    %13 = vector.broadcast %cst_7 : f32 to vector<16x128xf32>
    %14 = arith.mulf %13, %12 : vector<16x128xf32>
    %15 = math.tanh %14 : vector<16x128xf32>
    %cst_8 = arith.constant 1.000000e+00 : f32
    %16 = vector.broadcast %cst_8 : f32 to vector<16x128xf32>
    %17 = arith.addf %16, %15 : vector<16x128xf32>
    %18 = arith.mulf %7, %17 : vector<16x128xf32>
    %19 = arith.truncf %18 : vector<16x128xf32> to vector<16x128xbf16>
    %c0_9 = arith.constant 0 : index
    %c0_10 = arith.constant 0 : index
    %20 = vector.load %arg4[%c0_9, %c0_10] : memref<128x128xbf16, #tpu.memory_space<vmem>>, vector<128x128xbf16>
    %cst_11 = arith.constant dense<0.000000e+00> : vector<16x128xf32>
    %21 = tpu.matmul %19, %20, %cst_11 {dimension_numbers = #tpu.dot_dimension_numbers<[1], [0], [0], [1], [0, 0, 1, 1], [], []>} : vector<16x128xbf16>, vector<128x128xbf16>, vector<16x128xf32> -> vector<16x128xf32>
    %c0_12 = arith.constant 0 : index
    %c0_13 = arith.constant 0 : index
    %22 = vector.load %arg5[%c0_12, %c0_13] : memref<1x128xf32, #tpu.memory_space<vmem>>, vector<1x128xf32>
    %23 = vector.broadcast %22 : vector<1x128xf32> to vector<16x128xf32>
    %24 = arith.addf %21, %23 : vector<16x128xf32>
    %c0_14 = arith.constant 0 : index
    %c0_15 = arith.constant 0 : index
    %25 = vector.load %arg6[%c0_14, %c0_15] : memref<16x128xf32, #tpu.memory_space<vmem>>, vector<16x128xf32>
    tpu.vector_store %arg6[%c0_14, %c0_15], %24 {strides = array<i32>} : memref<16x128xf32, #tpu.memory_space<vmem>>, vector<16x128xf32>,
    return
  }
  func.func @transform_0(%arg0: i32) -> (i32, i32) {
    %c0_i32 = arith.constant 0 : i32
    %c0_i32_0 = arith.constant 0 : i32
    return %arg0, %c0_i32 : i32, i32
  }
  func.func @transform_1(%arg0: i32) -> (i32, i32) {
    %c0_i32 = arith.constant 0 : i32
    %c0_i32_0 = arith.constant 0 : i32
    %c0_i32_1 = arith.constant 0 : i32
    return %c0_i32, %c0_i32_0 : i32, i32
  }
  func.func @transform_2(%arg0: i32) -> (i32, i32) {
    %c0_i32 = arith.constant 0 : i32
    %c0_i32_0 = arith.constant 0 : i32
    %c0_i32_1 = arith.constant 0 : i32
    return %c0_i32, %c0_i32_0 : i32, i32
  }
  func.func @transform_3(%arg0: i32) -> (i32, i32) {
    %c0_i32 = arith.constant 0 : i32
    %c0_i32_0 = arith.constant 0 : i32
    %c0_i32_1 = arith.constant 0 : i32
    return %c0_i32, %c0_i32_0 : i32, i32
  }
  func.func @transform_4(%arg0: i32) -> (i32, i32) {
    %c0_i32 = arith.constant 0 : i32
    %c0_i32_0 = arith.constant 0 : i32
    %c0_i32_1 = arith.constant 0 : i32
    return %c0_i32, %c0_i32_0 : i32, i32
  }
  func.func @transform_5(%arg0: i32) -> (i32, i32) {
    %c0_i32 = arith.constant 0 : i32
    %c0_i32_0 = arith.constant 0 : i32
    return %arg0, %c0_i32 : i32, i32
  }
}

</mosaic_0001>

<llo_original>
// kernel: tpu_custom_call.1
$region0: #{tpu_custom_call.1}
  #allocation0 [shape = 'u32[]', space=smem, size = 0x4, offset = 0x4, fixed_abs, tag = 'smem constant byte address 0x4 - core index']
  #allocation1 [shape = 'u32[144,128]{1,0:T(1,128)}', space=vmem, size = 0x12000, scoped, tag = 'internal scratch']
  %s0 = inlined_call_operand.hbm [shape: bf16[16,256], index: 0, kind: input, shape index: {}]
  %s1 = inlined_call_operand.hbm [shape: bf16[256,128], index: 1, kind: input, shape index: {}]
  %s2 = inlined_call_operand.vmem [shape: f32[1,128], index: 2, kind: input, shape index: {}]
  %s3 = inlined_call_operand.hbm [shape: bf16[128,128], index: 3, kind: input, shape index: {}]
  %s4 = inlined_call_operand.vmem [shape: f32[1,128], index: 4, kind: input, shape index: {}]
  %s5 = inlined_call_operand.hbm [shape: f32[16,128], index: 5, kind: output, shape index: {}]
  %s6 = sld [smem:[#allocation0]]
  $region42: #{tpu_custom_call.1} parent=0
    _
  %s8 = ssub.s32 1, %s6
  %s9 = scalar_select 0, %s8, %s6
  $region1: #{tpu_custom_call.1} parent=0
    #allocation2 [shape = 'u8[8192]{0}', space=vmem, size = 0x2000, scoped, tag = 'input window, operand 0, single buffered']
    #allocation3 [shape = 's32[1]{0}', space=sflag, size = 0x4, scoped, tag = 'scoped memory for tpu_custom_call.1']
    #allocation4 [shape = 's32[1]{0}', space=sflag, size = 0x4, scoped, tag = 'scoped memory for tpu_custom_call.1']
    #allocation5 [shape = 'u8[65536]{0}', space=vmem, size = 0x10000, scoped, tag = 'input window, operand 1, single buffered']
    #allocation6 [shape = 's32[1]{0}', space=sflag, size = 0x4, scoped, tag = 'scoped memory for tpu_custom_call.1']
    #allocation7 [shape = 'u8[32768]{0}', space=vmem, size = 0x8000, scoped, tag = 'input window, operand 3, single buffered']
    #allocation8 [shape = 'u8[8192]{0}', space=vmem, size = 0x2000, scoped, tag = 'output window, operand 0, single buffered']
    %10 = vsyncpa [#allocation3], 0
    %11 = vsyncpa [#allocation6], 0
    %12 = vsyncpa [#allocation4], 0
    // Predicated region
    $region2: #{tpu_custom_call.1} parent=1 // pred_check
      _
    $region3: #{tpu_custom_call.1} parent=1 // pred_check_branch
      %14 = sbr.rel (0) target = $region5
    $region4: #{tpu_custom_call.1} parent=1 // pred_region
      %s16 = ssub.s32 256, 256
      %17 = vsyncadd [#allocation3], %s16
      %s18 = sshll.u32 [#allocation2], 4
      %s19 = int_to_ptr.vmem [resolvable:$true] %s18
      %24 = dma.hbm_to_vmem [thread:$0]  %s0, 256, %s19, [#allocation3], 128, 128, 8
    $region5: #{tpu_custom_call.1} parent=1 // pred_fallthru
      _
    // Predicated region
    $region6: #{tpu_custom_call.1} parent=1 // pred_check
      _
    $region7: #{tpu_custom_call.1} parent=1 // pred_check_branch
      %26 = sbr.rel (0) target = $region9
    $region8: #{tpu_custom_call.1} parent=1 // pred_region
      %s28 = ssub.s32 2048, 2048
      %29 = vsyncadd [#allocation6], %s28
      %s30 = sshll.u32 [#allocation5], 4
      %s31 = int_to_ptr.vmem [resolvable:$true] %s30
      %36 = dma.hbm_to_vmem [thread:$0]  %s1, 2048, %s31, [#allocation6], 64, 64, 4
    $region9: #{tpu_custom_call.1} parent=1 // pred_fallthru
      _
    // Predicated region
    $region10: #{tpu_custom_call.1} parent=1 // pred_check
      _
    $region11: #{tpu_custom_call.1} parent=1 // pred_check_branch
      %38 = sbr.rel (0) target = $region13
    $region12: #{tpu_custom_call.1} parent=1 // pred_region
      _
    $region13: #{tpu_custom_call.1} parent=1 // pred_fallthru
      _
    // Predicated region
    $region14: #{tpu_custom_call.1} parent=1 // pred_check
      _
    $region15: #{tpu_custom_call.1} parent=1 // pred_check_branch
      %40 = sbr.rel (0) target = $region17
    $region16: #{tpu_custom_call.1} parent=1 // pred_region
      %s42 = ssub.s32 1024, 1024
      %43 = vsyncadd [#allocation6], %s42
      %s44 = sshll.u32 [#allocation7], 4
      %s45 = int_to_ptr.vmem [resolvable:$true] %s44
      %50 = dma.hbm_to_vmem [thread:$0]  %s3, 1024, %s45, [#allocation6], 64, 64, 4
    $region17: #{tpu_custom_call.1} parent=1 // pred_fallthru
      _
    // Predicated region
    $region18: #{tpu_custom_call.1} parent=1 // pred_check
      _
    $region19: #{tpu_custom_call.1} parent=1 // pred_check_branch
      %52 = sbr.rel (0) target = $region21
    $region20: #{tpu_custom_call.1} parent=1 // pred_region
      _
    $region21: #{tpu_custom_call.1} parent=1 // pred_fallthru
      _
    // Predicated region
    $region22: #{tpu_custom_call.1} parent=1 // pred_check
      _
    $region23: #{tpu_custom_call.1} parent=1 // pred_check_branch
      %54 = sbr.rel (0) target = $region25
    $region24: #{tpu_custom_call.1} parent=1 // pred_region
      %55 = dma.done [#allocation3], 256
    $region25: #{tpu_custom_call.1} parent=1 // pred_fallthru
      _
    // Predicated region
    $region26: #{tpu_custom_call.1} parent=1 // pred_check
      _
    $region27: #{tpu_custom_call.1} parent=1 // pred_check_branch
      %57 = sbr.rel (0) target = $region29
    $region28: #{tpu_custom_call.1} parent=1 // pred_region
      %58 = dma.done [#allocation6], 2048
    $region29: #{tpu_custom_call.1} parent=1 // pred_fallthru
      _
    // Predicated region
    $region30: #{tpu_custom_call.1} parent=1 // pred_check
      _
    $region31: #{tpu_custom_call.1} parent=1 // pred_check_branch
      %60 = sbr.rel (0) target = $region33
    $region32: #{tpu_custom_call.1} parent=1 // pred_region
      %61 = dma.done [#allocation6], 1024
    $region33: #{tpu_custom_call.1} parent=1 // pred_fallthru
      _
    %v63 = vld [vmem:[#allocation2] sm:$0xff]
    %v64 = vld [vmem:[#allocation2 + $0x8] sm:$0xff]
    %v65 = vld [vmem:[#allocation5] sm:$0xf]
    %v66 = vld [vmem:[#allocation5 + $0x4] sm:$0xf]
    %v67 = vld [vmem:[#allocation5 + $0x8] sm:$0xf]
    %v68 = vld [vmem:[#allocation5 + $0xc] sm:$0xf]
    %v69 = vld [vmem:[#allocation5 + $0x10] sm:$0xf]
    %v70 = vld [vmem:[#allocation5 + $0x14] sm:$0xf]
    %v71 = vld [vmem:[#allocation5 + $0x18] sm:$0xf]
    %v72 = vld [vmem:[#allocation5 + $0x1c] sm:$0xf]
    %v73 = vld [vmem:[#allocation5 + $0x20] sm:$0xf]
    %v74 = vld [vmem:[#allocation5 + $0x24] sm:$0xf]
    %v75 = vld [vmem:[#allocation5 + $0x28] sm:$0xf]
    %v76 = vld [vmem:[#allocation5 + $0x2c] sm:$0xf]
    %v77 = vld [vmem:[#allocation5 + $0x30] sm:$0xf]
    %v78 = vld [vmem:[#allocation5 + $0x34] sm:$0xf]
    %v79 = vld [vmem:[#allocation5 + $0x38] sm:$0xf]
    %v80 = vld [vmem:[#allocation5 + $0x3c] sm:$0xf]
    %v81 = vld [vmem:[#allocation5 + $0x40] sm:$0xf]
    %v82 = vld [vmem:[#allocation5 + $0x44] sm:$0xf]
    %v83 = vld [vmem:[#allocation5 + $0x48] sm:$0xf]
    %v84 = vld [vmem:[#allocation5 + $0x4c] sm:$0xf]
    %v85 = vld [vmem:[#allocation5 + $0x50] sm:$0xf]
    %v86 = vld [vmem:[#allocation5 + $0x54] sm:$0xf]
    %v87 = vld [vmem:[#allocation5 + $0x58] sm:$0xf]
    %v88 = vld [vmem:[#allocation5 + $0x5c] sm:$0xf]
    %v89 = vld [vmem:[#allocation5 + $0x60] sm:$0xf]
    %v90 = vld [vmem:[#allocation5 + $0x64] sm:$0xf]
    %v91 = vld [vmem:[#allocation5 + $0x68] sm:$0xf]
    %v92 = vld [vmem:[#allocation5 + $0x6c] sm:$0xf]
    %v93 = vld [vmem:[#allocation5 + $0x70] sm:$0xf]
    %v94 = vld [vmem:[#allocation5 + $0x74] sm:$0xf]
    %v95 = vld [vmem:[#allocation5 + $0x78] sm:$0xf]
    %v96 = vld [vmem:[#allocation5 + $0x7c] sm:$0xf]
    %v97 = vld [vmem:[%s2] sm:$0x1]
    %v99 = vlaneseq
    %v100 = vshrl.u32 %v99, 7
    %v101 = vsub.s32 0, %v100
    %v102 = vrot.slane %v97, %v101
    %v106 = vunpack.c.l.b16 %v63
    %v107 = vunpack.c.h.b16 %v63
    %v108 = vunpack.c.l.b16 %v64
    %v109 = vunpack.c.h.b16 %v64
    %v110 = vpack.c.b16 %v108, %v106
    %v111 = vpack.c.b16 %v109, %v107
    %v146 = vunpack.c.l.b16 %v65
    %v147 = vunpack.c.l.b16 %v66
    %v148 = vunpack.c.l.b16 %v67
    %v149 = vunpack.c.l.b16 %v68
    %v150 = vunpack.c.l.b16 %v69
    %v151 = vunpack.c.l.b16 %v70
    %v152 = vunpack.c.l.b16 %v71
    %v153 = vunpack.c.l.b16 %v72
    %v154 = vunpack.c.l.b16 %v73
    %v155 = vunpack.c.l.b16 %v74
    %v156 = vunpack.c.l.b16 %v75
    %v157 = vunpack.c.l.b16 %v76
    %v158 = vunpack.c.l.b16 %v77
    %v159 = vunpack.c.l.b16 %v78
    %v160 = vunpack.c.l.b16 %v79
    %v161 = vunpack.c.l.b16 %v80
    %v162 = vunpack.c.l.b16 %v81
    %v163 = vunpack.c.l.b16 %v82
    %v164 = vunpack.c.l.b16 %v83
    %v165 = vunpack.c.l.b16 %v84
    %v166 = vunpack.c.l.b16 %v85
    %v167 = vunpack.c.l.b16 %v86
    %v168 = vunpack.c.l.b16 %v87
    %v169 = vunpack.c.l.b16 %v88
    %v170 = vunpack.c.l.b16 %v89
    %v171 = vunpack.c.l.b16 %v90
    %v172 = vunpack.c.l.b16 %v91
    %v173 = vunpack.c.l.b16 %v92
    %v174 = vunpack.c.l.b16 %v93
    %v175 = vunpack.c.l.b16 %v94
    %v176 = vunpack.c.l.b16 %v95
    %v177 = vunpack.c.l.b16 %v96
    %v178 = vpack.c.b16 %v147, %v146
    %v179 = vpack.c.b16 %v149, %v148
    %v180 = vpack.c.b16 %v151, %v150
    %v181 = vpack.c.b16 %v153, %v152
    %v182 = vpack.c.b16 %v155, %v154
    %v183 = vpack.c.b16 %v157, %v156
    %v184 = vpack.c.b16 %v159, %v158
    %v185 = vpack.c.b16 %v161, %v160
    %v186 = vpack.c.b16 %v163, %v162
    %v187 = vpack.c.b16 %v165, %v164
    %v188 = vpack.c.b16 %v167, %v166
    %v189 = vpack.c.b16 %v169, %v168
    %v190 = vpack.c.b16 %v171, %v170
    %v191 = vpack.c.b16 %v173, %v172
    %v192 = vpack.c.b16 %v175, %v174
    %v193 = vpack.c.b16 %v177, %v176
    %210 = vmatprep.subr.bf16.mxu0 0
    %211 = vmatpush1.bf16.msra.mxu0 %v185
    %212 = vmatprep.subr.bf16.mxu0 0
    %213 = vmatpush1.bf16.msra.mxu0 %v184
    %214 = vmatprep.subr.bf16.mxu0 0
    %215 = vmatpush1.bf16.msra.mxu0 %v183
    %216 = vmatprep.subr.bf16.mxu0 0
    %217 = vmatpush1.bf16.msra.mxu0 %v182
    %218 = vmatprep.subr.bf16.mxu0 0
    %219 = vmatpush1.bf16.msra.mxu0 %v181
    %220 = vmatprep.subr.bf16.mxu0 0
    %221 = vmatpush1.bf16.msra.mxu0 %v180
    %222 = vmatprep.subr.bf16.mxu0 0
    %223 = vmatpush1.bf16.msra.mxu0 %v179
    %224 = vmatprep.subr.bf16.mxu0 0
    %225 = vmatpush1.bf16.msra.mxu0 %v178
    %226 = vmatprep.subr.bf16.mxu0 0
    %227 = vmatpush2.bf16.msra.mxu0 %v193
    %228 = vmatprep.subr.bf16.mxu0 0
    %229 = vmatpush2.bf16.msra.mxu0 %v192
    %230 = vmatprep.subr.bf16.mxu0 0
    %231 = vmatpush2.bf16.msra.mxu0 %v191
    %232 = vmatprep.subr.bf16.mxu0 0
    %233 = vmatpush2.bf16.msra.mxu0 %v190
    %234 = vmatprep.subr.bf16.mxu0 0
    %235 = vmatpush2.bf16.msra.mxu0 %v189
    %236 = vmatprep.subr.bf16.mxu0 0
    %237 = vmatpush2.bf16.msra.mxu0 %v188
    %238 = vmatprep.subr.bf16.mxu0 0
    %239 = vmatpush2.bf16.msra.mxu0 %v187
    %240 = vmatprep.subr.bf16.mxu0 0
    %241 = vmatpush2.bf16.msra.mxu0 %v186
    %242 = vmatprep.mubr.bf16.mxu0 %v111
    %243 = vmatmul.mubr.bf16.gmra.mxu0 %v110
    %v244 = vpop.f32.mrf.mxu0
    %v245 = vadd.f32 %v102, %v244
    %v246 = vpop.f32.mrf.mxu0
    %v247 = vpop.f32.mrf.mxu0
    %v248 = vadd.f32 %v102, %v247
    %v249 = vpop.f32.mrf.mxu0
    %250 = vdwg.mxu0
    %v251 = vmul.f32 %v245, 0.5
    %v252 = vmul.f32 %v248, 0.5
    %v253 = vmul.f32 %v245, %v245
    %v254 = vmul.f32 %v248, %v248
    %v255 = vmul.f32 %v253, %v245
    %v256 = vmul.f32 %v254, %v248
    %v257 = vmul.f32 %v255, 0.044715
    %v258 = vmul.f32 %v256, 0.044715
    %v259 = vadd.f32 %v245, %v257
    %v260 = vadd.f32 %v248, %v258
    %v261 = vmul.f32 %v259, 0.7978846
    %v262 = vmul.f32 %v260, 0.7978846
    %v263 = vtanh.pop %v261
    %v264 = vtanh.pop %v262
    %v265 = vadd.f32 %v263, 1.0
    %v266 = vadd.f32 %v264, 1.0
    %v267 = vmul.f32 %v251, %v265
    %v268 = vmul.f32 %v252, %v266
    %v269 = vpack.c.bf16 %v268, %v267
    %v270 = vld [vmem:[#allocation7] sm:$0xf]
    %v271 = vld [vmem:[#allocation7 + $0x4] sm:$0xf]
    %v272 = vld [vmem:[#allocation7 + $0x8] sm:$0xf]
    %v273 = vld [vmem:[#allocation7 + $0xc] sm:$0xf]
    %v274 = vld [vmem:[#allocation7 + $0x10] sm:$0xf]
    %v275 = vld [vmem:[#allocation7 + $0x14] sm:$0xf]
    %v276 = vld [vmem:[#allocation7 + $0x18] sm:$0xf]
    %v277 = vld [vmem:[#allocation7 + $0x1c] sm:$0xf]
    %v278 = vld [vmem:[#allocation7 + $0x20] sm:$0xf]
    %v279 = vld [vmem:[#allocation7 + $0x24] sm:$0xf]
    %v280 = vld [vmem:[#allocation7 + $0x28] sm:$0xf]
    %v281 = vld [vmem:[#allocation7 + $0x2c] sm:$0xf]
    %v282 = vld [vmem:[#allocation7 + $0x30] sm:$0xf]
    %v283 = vld [vmem:[#allocation7 + $0x34] sm:$0xf]
    %v284 = vld [vmem:[#allocation7 + $0x38] sm:$0xf]
    %v285 = vld [vmem:[#allocation7 + $0x3c] sm:$0xf]
    %v286 = vld [vmem:[%s4] sm:$0x1]
    %v288 = vlaneseq
    %v289 = vshrl.u32 %v288, 7
    %v290 = vsub.s32 0, %v289
    %v291 = vrot.slane %v286, %v290
    %v309 = vunpack.c.l.b16 %v270
    %v310 = vunpack.c.l.b16 %v271
    %v311 = vunpack.c.l.b16 %v272
    %v312 = vunpack.c.l.b16 %v273
    %v313 = vunpack.c.l.b16 %v274
    %v314 = vunpack.c.l.b16 %v275
    %v315 = vunpack.c.l.b16 %v276
    %v316 = vunpack.c.l.b16 %v277
    %v317 = vunpack.c.l.b16 %v278
    %v318 = vunpack.c.l.b16 %v279
    %v319 = vunpack.c.l.b16 %v280
    %v320 = vunpack.c.l.b16 %v281
    %v321 = vunpack.c.l.b16 %v282
    %v322 = vunpack.c.l.b16 %v283
    %v323 = vunpack.c.l.b16 %v284
    %v324 = vunpack.c.l.b16 %v285
    %v325 = vpack.c.b16 %v310, %v309
    %v326 = vpack.c.b16 %v312, %v311
    %v327 = vpack.c.b16 %v314, %v313
    %v328 = vpack.c.b16 %v316, %v315
    %v329 = vpack.c.b16 %v318, %v317
    %v330 = vpack.c.b16 %v320, %v319
    %v331 = vpack.c.b16 %v322, %v321
    %v332 = vpack.c.b16 %v324, %v323
    %341 = vmatprep.subr.bf16.mxu0 0
    %342 = vmatpush1.bf16.msra.mxu0 %v332
    %343 = vmatprep.subr.bf16.mxu0 0
    %344 = vmatpush1.bf16.msra.mxu0 %v331
    %345 = vmatprep.subr.bf16.mxu0 0
    %346 = vmatpush1.bf16.msra.mxu0 %v330
    %347 = vmatprep.subr.bf16.mxu0 0
    %348 = vmatpush1.bf16.msra.mxu0 %v329
    %349 = vmatprep.subr.bf16.mxu0 0
    %350 = vmatpush1.bf16.msra.mxu0 %v328
    %351 = vmatprep.subr.bf16.mxu0 0
    %352 = vmatpush1.bf16.msra.mxu0 %v327
    %353 = vmatprep.subr.bf16.mxu0 0
    %354 = vmatpush1.bf16.msra.mxu0 %v326
    %355 = vmatprep.subr.bf16.mxu0 0
    %356 = vmatpush1.bf16.msra.mxu0 %v325
    %357 = vmatprep.subr.bf16.mxu0 0
    %358 = vmatpush2.bf16.msra.mxu0 0
    %359 = vmatprep.subr.bf16.mxu0 0
    %360 = vmatpush2.bf16.msra.mxu0 0
    %361 = vmatprep.subr.bf16.mxu0 0
    %362 = vmatpush2.bf16.msra.mxu0 0
    %363 = vmatprep.subr.bf16.mxu0 0
    %364 = vmatpush2.bf16.msra.mxu0 0
    %365 = vmatprep.subr.bf16.mxu0 0
    %366 = vmatpush2.bf16.msra.mxu0 0
    %367 = vmatprep.subr.bf16.mxu0 0
    %368 = vmatpush2.bf16.msra.mxu0 0
    %369 = vmatprep.subr.bf16.mxu0 0
    %370 = vmatpush2.bf16.msra.mxu0 0
    %371 = vmatprep.subr.bf16.mxu0 0
    %372 = vmatpush2.bf16.msra.mxu0 0
    %373 = vmatprep.mubr.bf16.mxu0 0
    %374 = vmatmul.mubr.bf16.gmra.mxu0 %v269
    %v375 = vpop.f32.mrf.mxu0
    %v376 = vadd.f32 %v291, %v375
    %v377 = vpop.f32.mrf.mxu0
    %v378 = vpop.f32.mrf.mxu0
    %v379 = vadd.f32 %v291, %v378
    %v380 = vpop.f32.mrf.mxu0
    %381 = vdwg.mxu0
    %382 = vst [vmem:[#allocation8] sm:$0xff] %v376
    %383 = vst [vmem:[#allocation8 + $0x8] sm:$0xff] %v379
    // Predicated region
    $region34: #{tpu_custom_call.1} parent=1 // pred_check
      _
    $region35: #{tpu_custom_call.1} parent=1 // pred_check_branch
      %385 = sbr.rel (0) target = $region37
    $region36: #{tpu_custom_call.1} parent=1 // pred_region
      %s387 = ssub.s32 256, 256
      %388 = vsyncadd [#allocation4], %s387
      %s389 = sshll.u32 [#allocation8], 4
      %s390 = int_to_ptr.vmem [resolvable:$true] %s389
      %395 = dma.vmem_to_hbm [thread:$0]  %s390, 256, %s5, [#allocation4], 128, 128, 8
    $region37: #{tpu_custom_call.1} parent=1 // pred_fallthru
      _
    // Predicated region
    $region38: #{tpu_custom_call.1} parent=1 // pred_check
      _
    $region39: #{tpu_custom_call.1} parent=1 // pred_check_branch
      %397 = sbr.rel (0) target = $region41
    $region40: #{tpu_custom_call.1} parent=1 // pred_region
      %398 = dma.done [#allocation4], 256
    $region41: #{tpu_custom_call.1} parent=1 // pred_fallthru
      _
    %399 = vsyncpa [#allocation3], 1
    %400 = vsyncpa [#allocation6], 1
    %401 = vsyncpa [#allocation4], 1

</llo_original>
